<compile_context>
chip_gen: v7x
topology: tpu7x:2x2x1
jax: 0.10.0
libtpu: 0.0.40
codegen_flags: <defaults>
</compile_context>

<pallas_src>
import functools

import jax
import jax.numpy as jnp
from jax.experimental import pallas as pl
from jax.experimental.pallas import tpu as pltpu


def _round_up(a, b):
    return (a + b - 1) // b * b


def _silu(x):
    # SiLU with sigmoid(x) = 0.5*(tanh(0.5*x) + 1): one EUP op (tanh) per
    # element instead of exp + reciprocal; the extra mul/add is VPU filler.
    return x * (jnp.tanh(x * 0.5) * 0.5 + 0.5)


def bottleneck_kernel(x_ref, m_ref, w1_ref, b1_ref, w2_ref, b2_ref, o_ref, *,
                      W, add):
    """Spatial-on-lanes Bottleneck block (one batch block per grid step).

    x_ref  : (C1p, L)      L = nb*H*W, lane index = n*H*W + h*W + w  (cd)
    m_ref  : (8, L)        precomputed {0,1} border masks, one row per
                           non-center tap in (kh, kw) order           (cd)
    w1_ref : (C_p, C1p)    BN-folded 1x1 conv weight                  (cd)
    b1_ref : (C_p, 1)      BN-folded 1x1 conv bias                    (f32)
    w2_ref : (C2, 9*C_p)   BN-folded 3x3 conv weight,
                           K index = (kh*3+kw)*C_p + c                (cd)
    b2_ref : (C2, 1)       BN-folded 3x3 conv bias                    (f32)
    o_ref  : (C2, L)       lane-dense output                          (cd)
    """
    cd = x_ref.dtype
    C_p = w1_ref.shape[0]
    C2 = w2_ref.shape[0]
    L = x_ref.shape[1]

    x = x_ref[...]                                            # (C1p, L) cd

    # ---- cv1: 1x1 conv == (C_p, C1p) @ (C1p, L), lane-dense -----------------
    y1 = jnp.dot(w1_ref[...], x, preferred_element_type=jnp.float32)
    y1 = _silu((y1 + b1_ref[...]).astype(cd))                 # (C_p, L) cd

    # ---- cv2: 3x3 conv (pad=1, stride=1) as 3 accumulating K=3*C_p matmuls --
    # Tap (kh, kw) is a lane roll of y1 by -(dh*W + dw) (XLU) times a
    # precomputed border mask; rolls never leak across images because every
    # lane that could receive a neighbour image's data is a zero-masked
    # (padding) lane.  Each per-kh group is built just before its dot, so no
    # persistent im2col scratch is materialized.
    acc = None
    mi = 0
    for kh in range(3):
        dh = kh - 1
        taps = []
        for kw in range(3):
            dw = kw - 1
            s = dh * W + dw                                   # flat source offset
            t = y1 if s == 0 else pltpu.roll(y1, (-s) % L, axis=1)
            if not (dh == 0 and dw == 0):
                t = t * m_ref[mi:mi + 1, :]                   # {0,1} mask, cd
                mi += 1
            taps.append(t)
        g = jnp.concatenate(taps, axis=0)                     # (3*C_p, L) cd
        w_kh = w2_ref[:, 3 * C_p * kh:3 * C_p * (kh + 1)]     # (C2, 3*C_p) cd
        d = jnp.dot(w_kh, g, preferred_element_type=jnp.float32)
        acc = d if acc is None else acc + d                   # f32 accumulate

    y2 = _silu((acc + b2_ref[...]).astype(cd))                # (C2, L) cd

    # ---- shortcut add --------------------------------------------------------
    if add:
        y2 = y2 + x[:C2, :]                                   # C1 == C2; padded
                                                              # rows excluded
    o_ref[...] = y2.astype(o_ref.dtype)


def bottleneck_forward(x_nchw, w1_mat, b1_col, w2_mat, b2_col, *, add,
                       compute_dtype=jnp.bfloat16, images_per_block=None,
                       vmem_budget_bytes=12 * 1024 * 1024):
    """x_nchw: (N, C1, H, W).  Returns (N, C2, H, W) in compute_dtype."""
    N, C1, H, W = x_nchw.shape
    C_ = w1_mat.shape[0]
    C2 = w2_mat.shape[0]
    HW = H * W
    assert H >= 2 and W >= 2
    cd = jnp.dtype(compute_dtype)
    cd_size = cd.itemsize

    # Sublane-aligned channel padding (zeros are exact: silu(0)=0 and the
    # padded w2 columns are zero, so padded channels contribute nothing).
    C_p = _round_up(C_, 16)
    C1p = _round_up(C1, 8)

    # Layout plumbing (wrapper side): channels -> sublanes, (N, H, W) -> lanes.
    # Kernel I/O is carried in the compute dtype (bf16 on the fast path).
    x_cl = jnp.transpose(x_nchw, (1, 0, 2, 3)).reshape(C1, N * HW)
    if C1p != C1:
        x_cl = jnp.pad(x_cl, ((0, C1p - C1), (0, 0)))
    x_cl = x_cl.astype(cd)

    w1_k = jnp.pad(w1_mat, ((0, C_p - C_), (0, C1p - C1))).astype(cd)
    b1_k = jnp.pad(b1_col, ((0, C_p - C_), (0, 0))).astype(jnp.float32)
    w2_k = jnp.pad(w2_mat.reshape(C2, 9, C_), ((0, 0), (0, 0), (0, C_p - C_)))
    w2_k = w2_k.reshape(C2, 9 * C_p).astype(cd)
    b2_k = b2_col.astype(jnp.float32)

    # VMEM-budget-driven batch blocking: largest nb whose per-step footprint
    # fits the budget while keeping >= 2 grid steps when N >= 2 (megacore).
    per_image = HW * (
        2 * (C1p + C2 + 8) * cd_size          # double-buffered x / out / mask
        + (C_p + 3 * C_p + C_p) * cd_size     # y1, per-kh group, rolled tap
        + (C_p + 2 * C2) * 4                  # f32 dot results / accumulator
    )
    if images_per_block is None:
        images_per_block = 1
        for cand in range(1, N + 1):
            if N % cand:
                continue
            if cand * per_image > vmem_budget_bytes:
                continue
            if N >= 2 and N // cand < 2:
                continue
            images_per_block = cand
    nb = images_per_block
    assert N % nb == 0
    L = nb * HW
    assert L % 128 == 0, "nb*H*W must be a multiple of 128 (lane dimension)"

    # Precompute the 8 non-center border masks once (avoids per-step integer
    # div/mod by a non-power-of-2 W inside the kernel).  The mask pattern only
    # depends on lane % (H*W), so one (8, L) block serves every grid step.
    lane = jnp.arange(L, dtype=jnp.int32)
    col_i = lane % W
    row_i = (lane % HW) // W
    mask_rows = []
    for kh in range(3):
        dh = kh - 1
        for kw in range(3):
            dw = kw - 1
            if dh == 0 and dw == 0:
                continue
            m = jnp.ones((L,), dtype=bool)
            if dh == -1:
                m = m & (row_i >= 1)
            elif dh == 1:
                m = m & (row_i <= H - 2)
            if dw == -1:
                m = m & (col_i >= 1)
            elif dw == 1:
                m = m & (col_i <= W - 2)
            mask_rows.append(m)
    masks = jnp.stack(mask_rows, axis=0).astype(cd)           # (8, L)

    # Explicit scoped-VMEM limit sized from the per-step footprint.
    weight_bytes = 2 * (w1_k.size + w2_k.size) * cd_size \
        + 2 * (b1_k.size + b2_k.size) * 4
    step_bytes = nb * per_image + weight_bytes
    vmem_limit = int(min(48 * 1024 * 1024,
                         max(16 * 1024 * 1024, 2 * step_bytes)))

    kernel = functools.partial(bottleneck_kernel, W=W, add=add)

    out_cl = pl.pallas_call(
        kernel,
        out_shape=jax.ShapeDtypeStruct((C2, N * HW), cd),
        grid_spec=pltpu.PrefetchScalarGridSpec(
            num_scalar_prefetch=0,
            grid=(N // nb,),
            in_specs=[
                pl.BlockSpec((C1p, L), lambda i: (0, i)),
                pl.BlockSpec((8, L), lambda i: (0, 0)),
                pl.BlockSpec((C_p, C1p), lambda i: (0, 0)),
                pl.BlockSpec((C_p, 1), lambda i: (0, 0)),
                pl.BlockSpec((C2, 9 * C_p), lambda i: (0, 0)),
                pl.BlockSpec((C2, 1), lambda i: (0, 0)),
            ],
            out_specs=pl.BlockSpec((C2, L), lambda i: (0, i)),
        ),
        compiler_params=pltpu.CompilerParams(
            dimension_semantics=("parallel",),
            vmem_limit_bytes=vmem_limit),
    )(x_cl, masks, w1_k, b1_k, w2_k, b2_k)

    # Undo the layout plumbing: (C2, N*H*W) -> (N, C2, H, W).
    return jnp.transpose(out_cl.reshape(C2, N, H, W), (1, 0, 2, 3))


def ref_forward(x_nchw, p, *, add):
    """Pure-JAX f32 reference (same BN-folded weights)."""
    x = jnp.transpose(x_nchw, (0, 2, 3, 1))
    dn = ('NHWC', 'HWIO', 'NHWC')
    y1 = jax.lax.conv_general_dilated(x, p['w1_hwio'], (1, 1), 'VALID',
                                      dimension_numbers=dn)
    y1 = jax.nn.silu(y1 + p['b1_row'])
    y2 = jax.lax.conv_general_dilated(y1, p['w2_hwio'], (1, 1), 'SAME',
                                      dimension_numbers=dn)
    y2 = jax.nn.silu(y2 + p['b2_row'])
    out = x + y2 if add else y2
    return jnp.transpose(out, (0, 3, 1, 2))


def make_params(key, c1, c2, e=0.5):
    """Deterministic synthetic conv weights + BN stats, BN folded (eps=1e-5)."""
    c_ = int(c2 * e)
    eps = 1e-5
    ks = jax.random.split(key, 10)

    # torch-style conv weights: (Cout, Cin, KH, KW), no conv bias
    w1_t = jax.random.normal(ks[0], (c_, c1, 1, 1), jnp.float32) * 0.2
    w2_t = jax.random.normal(ks[1], (c2, c_, 3, 3), jnp.float32) * 0.2

    g1 = jax.random.uniform(ks[2], (c_,), minval=0.5, maxval=1.5)
    be1 = jax.random.normal(ks[3], (c_,)) * 0.1
    m1 = jax.random.normal(ks[4], (c_,)) * 0.1
    v1 = jax.random.uniform(ks[5], (c_,), minval=0.5, maxval=1.5)
    g2 = jax.random.uniform(ks[6], (c2,), minval=0.5, maxval=1.5)
    be2 = jax.random.normal(ks[7], (c2,)) * 0.1
    m2 = jax.random.normal(ks[8], (c2,)) * 0.1
    v2 = jax.random.uniform(ks[9], (c2,), minval=0.5, maxval=1.5)

    # Fold BN: w_eff = w * gamma/sqrt(var+eps); b_eff = beta - mean*scale
    s1 = g1 / jnp.sqrt(v1 + eps)
    w1_mat = w1_t[:, :, 0, 0] * s1[:, None]                     # (C_, C1)
    b1 = be1 - m1 * s1                                          # (C_,)

    s2 = g2 / jnp.sqrt(v2 + eps)
    w2_sc = w2_t * s2[:, None, None, None]                      # (C2, C_, 3, 3)
    # kernel layout: [o, (kh*3+kw)*C_ + c] == w2_sc[o, c, kh, kw]
    w2_mat = jnp.transpose(w2_sc, (0, 2, 3, 1)).reshape(c2, 9 * c_)
    w2_hwio = jnp.transpose(w2_sc, (2, 3, 1, 0))                # (3, 3, C_, C2)
    b2 = be2 - m2 * s2                                          # (C2,)

    return dict(
        # kernel layouts
        w1_mat=w1_mat, b1_col=b1.reshape(c_, 1),
        w2_mat=w2_mat, b2_col=b2.reshape(c2, 1),
        # reference layouts
        w1_hwio=w1_mat.T.reshape(1, 1, c1, c_), b1_row=b1.reshape(1, c_),
        w2_hwio=w2_hwio, b2_row=b2.reshape(1, c2),
    )


if __name__ == "__main__":
    key = jax.random.PRNGKey(0)
    k_x, k_p = jax.random.split(key)

    # Bottleneck(c1=8, c2=8, shortcut=True, g=1, e=0.5) -> c_ = 4, add = True
    N, C1, C2, H, W = 2, 8, 8, 16, 16
    shortcut = True
    add = shortcut and (C1 == C2)

    x = jax.random.normal(k_x, (N, C1, H, W), jnp.float32)
    p = make_params(k_p, C1, C2, e=0.5)
    ref = ref_forward(x, p, add=add)

    # Strict correctness: all-f32 compute path (also the v5e path).
    out_f32 = bottleneck_forward(x, p['w1_mat'], p['b1_col'], p['w2_mat'],
                                 p['b2_col'], add=add,
                                 compute_dtype=jnp.float32)
    out_f32 = jax.block_until_ready(out_f32)
    assert out_f32.shape == (N, C2, H, W)
    err_f32 = jnp.max(jnp.abs(out_f32 - ref))
    assert jnp.allclose(out_f32, ref, rtol=1e-3, atol=1e-3), \
        f"f32 max abs err {err_f32}"

    # Fast path (v6e/v7x): bf16 I/O, bf16 MXU operands and epilogue, f32
    # accumulation.
    out_bf16 = bottleneck_forward(x, p['w1_mat'], p['b1_col'], p['w2_mat'],
                                  p['b2_col'], add=add,
                                  compute_dtype=jnp.bfloat16)
    out_bf16 = jax.block_until_ready(out_bf16)
    out_bf16_f32 = out_bf16.astype(jnp.float32)
    err_bf16 = jnp.max(jnp.abs(out_bf16_f32 - ref))
    assert jnp.allclose(out_bf16_f32, ref, rtol=5e-2, atol=1e-1), \
        f"bf16 max abs err {err_bf16}"

    print("KERNEL_OK")
</pallas_src>

<mosaic_0001>
module attributes {stable_mosaic.version = 11 : i64} {
  func.func @bottleneck_kernel(%arg0: i32, %arg1: memref<8x256xf32, #tpu.memory_space<vmem>>, %arg2: memref<8x256xf32, #tpu.memory_space<vmem>>, %arg3: memref<16x8xf32, #tpu.memory_space<vmem>>, %arg4: memref<16x1xf32, #tpu.memory_space<vmem>>, %arg5: memref<8x144xf32, #tpu.memory_space<vmem>>, %arg6: memref<8x1xf32, #tpu.memory_space<vmem>>, %arg7: memref<8x256xf32, #tpu.memory_space<vmem>>) attributes {dimension_semantics = [#tpu.dimension_semantics<parallel>], iteration_bounds = array<i64: 2>, scalar_prefetch = 0 : i64, scratch_operands = 0 : i64, tpu.core_type = #tpu.core_type<tc>, window_params = [{transform_indices = @transform_0, window_bounds = array<i64: 8, 256>}, {pipeline_mode = #tpu.pipeline_mode<synchronous>, transform_indices = @transform_1, window_bounds = array<i64: 8, 256>}, {pipeline_mode = #tpu.pipeline_mode<synchronous>, transform_indices = @transform_2, window_bounds = array<i64: 16, 8>}, {pipeline_mode = #tpu.pipeline_mode<synchronous>, transform_indices = @transform_3, window_bounds = array<i64: 16, 1>}, {pipeline_mode = #tpu.pipeline_mode<synchronous>, transform_indices = @transform_4, window_bounds = array<i64: 8, 144>}, {pipeline_mode = #tpu.pipeline_mode<synchronous>, transform_indices = @transform_5, window_bounds = array<i64: 8, 1>}, {transform_indices = @transform_6, window_bounds = array<i64: 8, 256>}]} {
    %c0 = arith.constant 0 : index
    %c0_0 = arith.constant 0 : index
    %0 = vector.load %arg1[%c0, %c0_0] : memref<8x256xf32, #tpu.memory_space<vmem>>, vector<8x256xf32>
    %c0_1 = arith.constant 0 : index
    %c0_2 = arith.constant 0 : index
    %1 = vector.load %arg3[%c0_1, %c0_2] : memref<16x8xf32, #tpu.memory_space<vmem>>, vector<16x8xf32>
    %cst = arith.constant dense<0.000000e+00> : vector<16x256xf32>
    %2 = tpu.matmul %1, %0, %cst {dimension_numbers = #tpu.dot_dimension_numbers<[1], [0], [0], [1], [0, 0, 1, 1], [], []>} : vector<16x8xf32>, vector<8x256xf32>, vector<16x256xf32> -> vector<16x256xf32>
    %c0_3 = arith.constant 0 : index
    %c0_4 = arith.constant 0 : index
    %3 = vector.load %arg4[%c0_3, %c0_4] : memref<16x1xf32, #tpu.memory_space<vmem>>, vector<16x1xf32>
    %4 = vector.broadcast %3 : vector<16x1xf32> to vector<16x256xf32>
    %5 = arith.addf %2, %4 : vector<16x256xf32>
    %cst_5 = arith.constant 5.000000e-01 : f32
    %6 = vector.broadcast %cst_5 : f32 to vector<16x256xf32>
    %7 = arith.mulf %5, %6 : vector<16x256xf32>
    %8 = math.tanh %7 : vector<16x256xf32>
    %cst_6 = arith.constant 5.000000e-01 : f32
    %9 = vector.broadcast %cst_6 : f32 to vector<16x256xf32>
    %10 = arith.mulf %8, %9 : vector<16x256xf32>
    %cst_7 = arith.constant 5.000000e-01 : f32
    %11 = vector.broadcast %cst_7 : f32 to vector<16x256xf32>
    %12 = arith.addf %10, %11 : vector<16x256xf32>
    %13 = arith.mulf %5, %12 : vector<16x256xf32>
    %c17_i32 = arith.constant 17 : i32
    %14 = tpu.dynamic_rotate %13 by %c17_i32 dim 1 : vector<16x256xf32>, i32 -> vector<16x256xf32>
    %c0_8 = arith.constant 0 : index
    %c0_9 = arith.constant 0 : index
    %15 = vector.load %arg2[%c0_8, %c0_9] : memref<8x256xf32, #tpu.memory_space<vmem>>, vector<1x256xf32>
    %16 = vector.broadcast %15 : vector<1x256xf32> to vector<16x256xf32>
    %17 = arith.mulf %14, %16 : vector<16x256xf32>
    %c16_i32 = arith.constant 16 : i32
    %18 = tpu.dynamic_rotate %13 by %c16_i32 dim 1 : vector<16x256xf32>, i32 -> vector<16x256xf32>
    %c1 = arith.constant 1 : index
    %c0_10 = arith.constant 0 : index
    %19 = vector.load %arg2[%c1, %c0_10] : memref<8x256xf32, #tpu.memory_space<vmem>>, vector<1x256xf32>
    %20 = vector.broadcast %19 : vector<1x256xf32> to vector<16x256xf32>
    %21 = arith.mulf %18, %20 : vector<16x256xf32>
    %c15_i32 = arith.constant 15 : i32
    %22 = tpu.dynamic_rotate %13 by %c15_i32 dim 1 : vector<16x256xf32>, i32 -> vector<16x256xf32>
    %c2 = arith.constant 2 : index
    %c0_11 = arith.constant 0 : index
    %23 = vector.load %arg2[%c2, %c0_11] : memref<8x256xf32, #tpu.memory_space<vmem>>, vector<1x256xf32>
    %24 = vector.broadcast %23 : vector<1x256xf32> to vector<16x256xf32>
    %25 = arith.mulf %22, %24 : vector<16x256xf32>
    %26 = tpu.concatenate %17, %21, %25 in 0 : vector<16x256xf32>, vector<16x256xf32>, vector<16x256xf32> -> vector<48x256xf32>
    %c0_12 = arith.constant 0 : index
    %c0_13 = arith.constant 0 : index
    %27 = vector.load %arg5[%c0_12, %c0_13] : memref<8x144xf32, #tpu.memory_space<vmem>>, vector<8x48xf32>
    %cst_14 = arith.constant dense<0.000000e+00> : vector<8x256xf32>
    %28 = tpu.matmul %27, %26, %cst_14 {dimension_numbers = #tpu.dot_dimension_numbers<[1], [0], [0], [1], [0, 0, 1, 1], [], []>} : vector<8x48xf32>, vector<48x256xf32>, vector<8x256xf32> -> vector<8x256xf32>
    %c1_i32 = arith.constant 1 : i32
    %29 = tpu.dynamic_rotate %13 by %c1_i32 dim 1 : vector<16x256xf32>, i32 -> vector<16x256xf32>
    %c3 = arith.constant 3 : index
    %c0_15 = arith.constant 0 : index
    %30 = vector.load %arg2[%c3, %c0_15] : memref<8x256xf32, #tpu.memory_space<vmem>>, vector<1x256xf32>
    %31 = vector.broadcast %30 : vector<1x256xf32> to vector<16x256xf32>
    %32 = arith.mulf %29, %31 : vector<16x256xf32>
    %c255_i32 = arith.constant 255 : i32
    %33 = tpu.dynamic_rotate %13 by %c255_i32 dim 1 : vector<16x256xf32>, i32 -> vector<16x256xf32>
    %c4 = arith.constant 4 : index
    %c0_16 = arith.constant 0 : index
    %34 = vector.load %arg2[%c4, %c0_16] : memref<8x256xf32, #tpu.memory_space<vmem>>, vector<1x256xf32>
    %35 = vector.broadcast %34 : vector<1x256xf32> to vector<16x256xf32>
    %36 = arith.mulf %33, %35 : vector<16x256xf32>
    %37 = tpu.concatenate %32, %13, %36 in 0 : vector<16x256xf32>, vector<16x256xf32>, vector<16x256xf32> -> vector<48x256xf32>
    %c0_17 = arith.constant 0 : index
    %c48 = arith.constant 48 : index
    %38 = vector.load %arg5[%c0_17, %c48] : memref<8x144xf32, #tpu.memory_space<vmem>>, vector<8x48xf32>
    %cst_18 = arith.constant dense<0.000000e+00> : vector<8x256xf32>
    %39 = tpu.matmul %38, %37, %cst_18 {dimension_numbers = #tpu.dot_dimension_numbers<[1], [0], [0], [1], [0, 0, 1, 1], [], []>} : vector<8x48xf32>, vector<48x256xf32>, vector<8x256xf32> -> vector<8x256xf32>
    %40 = arith.addf %28, %39 : vector<8x256xf32>
    %c241_i32 = arith.constant 241 : i32
    %41 = tpu.dynamic_rotate %13 by %c241_i32 dim 1 : vector<16x256xf32>, i32 -> vector<16x256xf32>
    %c5 = arith.constant 5 : index
    %c0_19 = arith.constant 0 : index
    %42 = vector.load %arg2[%c5, %c0_19] : memref<8x256xf32, #tpu.memory_space<vmem>>, vector<1x256xf32>
    %43 = vector.broadcast %42 : vector<1x256xf32> to vector<16x256xf32>
    %44 = arith.mulf %41, %43 : vector<16x256xf32>
    %c240_i32 = arith.constant 240 : i32
    %45 = tpu.dynamic_rotate %13 by %c240_i32 dim 1 : vector<16x256xf32>, i32 -> vector<16x256xf32>
    %c6 = arith.constant 6 : index
    %c0_20 = arith.constant 0 : index
    %46 = vector.load %arg2[%c6, %c0_20] : memref<8x256xf32, #tpu.memory_space<vmem>>, vector<1x256xf32>
    %47 = vector.broadcast %46 : vector<1x256xf32> to vector<16x256xf32>
    %48 = arith.mulf %45, %47 : vector<16x256xf32>
    %c239_i32 = arith.constant 239 : i32
    %49 = tpu.dynamic_rotate %13 by %c239_i32 dim 1 : vector<16x256xf32>, i32 -> vector<16x256xf32>
    %c7 = arith.constant 7 : index
    %c0_21 = arith.constant 0 : index
    %50 = vector.load %arg2[%c7, %c0_21] : memref<8x256xf32, #tpu.memory_space<vmem>>, vector<1x256xf32>
    %51 = vector.broadcast %50 : vector<1x256xf32> to vector<16x256xf32>
    %52 = arith.mulf %49, %51 : vector<16x256xf32>
    %53 = tpu.concatenate %44, %48, %52 in 0 : vector<16x256xf32>, vector<16x256xf32>, vector<16x256xf32> -> vector<48x256xf32>
    %c0_22 = arith.constant 0 : index
    %c96 = arith.constant 96 : index
    %54 = vector.load %arg5[%c0_22, %c96] : memref<8x144xf32, #tpu.memory_space<vmem>>, vector<8x48xf32>
    %cst_23 = arith.constant dense<0.000000e+00> : vector<8x256xf32>
    %55 = tpu.matmul %54, %53, %cst_23 {dimension_numbers = #tpu.dot_dimension_numbers<[1], [0], [0], [1], [0, 0, 1, 1], [], []>} : vector<8x48xf32>, vector<48x256xf32>, vector<8x256xf32> -> vector<8x256xf32>
    %56 = arith.addf %40, %55 : vector<8x256xf32>
    %c0_24 = arith.constant 0 : index
    %c0_25 = arith.constant 0 : index
    %57 = vector.load %arg6[%c0_24, %c0_25] : memref<8x1xf32, #tpu.memory_space<vmem>>, vector<8x1xf32>
    %58 = vector.broadcast %57 : vector<8x1xf32> to vector<8x256xf32>
    %59 = arith.addf %56, %58 : vector<8x256xf32>
    %cst_26 = arith.constant 5.000000e-01 : f32
    %60 = vector.broadcast %cst_26 : f32 to vector<8x256xf32>
    %61 = arith.mulf %59, %60 : vector<8x256xf32>
    %62 = math.tanh %61 : vector<8x256xf32>
    %cst_27 = arith.constant 5.000000e-01 : f32
    %63 = vector.broadcast %cst_27 : f32 to vector<8x256xf32>
    %64 = arith.mulf %62, %63 : vector<8x256xf32>
    %cst_28 = arith.constant 5.000000e-01 : f32
    %65 = vector.broadcast %cst_28 : f32 to vector<8x256xf32>
    %66 = arith.addf %64, %65 : vector<8x256xf32>
    %67 = arith.mulf %59, %66 : vector<8x256xf32>
    %68 = arith.addf %67, %0 : vector<8x256xf32>
    %c0_29 = arith.constant 0 : index
    %c0_30 = arith.constant 0 : index
    %69 = vector.load %arg7[%c0_29, %c0_30] : memref<8x256xf32, #tpu.memory_space<vmem>>, vector<8x256xf32>
    tpu.vector_store %arg7[%c0_29, %c0_30], %68 {strides = array<i32>} : memref<8x256xf32, #tpu.memory_space<vmem>>, vector<8x256xf32>,
    return
  }
  func.func @transform_0(%arg0: i32) -> (i32, i32) {
    %c0_i32 = arith.constant 0 : i32
    %c0_i32_0 = arith.constant 0 : i32
    return %c0_i32, %arg0 : i32, i32
  }
  func.func @transform_1(%arg0: i32) -> (i32, i32) {
    %c0_i32 = arith.constant 0 : i32
    %c0_i32_0 = arith.constant 0 : i32
    %c0_i32_1 = arith.constant 0 : i32
    return %c0_i32, %c0_i32_0 : i32, i32
  }
  func.func @transform_2(%arg0: i32) -> (i32, i32) {
    %c0_i32 = arith.constant 0 : i32
    %c0_i32_0 = arith.constant 0 : i32
    %c0_i32_1 = arith.constant 0 : i32
    return %c0_i32, %c0_i32_0 : i32, i32
  }
  func.func @transform_3(%arg0: i32) -> (i32, i32) {
    %c0_i32 = arith.constant 0 : i32
    %c0_i32_0 = arith.constant 0 : i32
    %c0_i32_1 = arith.constant 0 : i32
    return %c0_i32, %c0_i32_0 : i32, i32
  }
  func.func @transform_4(%arg0: i32) -> (i32, i32) {
    %c0_i32 = arith.constant 0 : i32
    %c0_i32_0 = arith.constant 0 : i32
    %c0_i32_1 = arith.constant 0 : i32
    return %c0_i32, %c0_i32_0 : i32, i32
  }
  func.func @transform_5(%arg0: i32) -> (i32, i32) {
    %c0_i32 = arith.constant 0 : i32
    %c0_i32_0 = arith.constant 0 : i32
    %c0_i32_1 = arith.constant 0 : i32
    return %c0_i32, %c0_i32_0 : i32, i32
  }
  func.func @transform_6(%arg0: i32) -> (i32, i32) {
    %c0_i32 = arith.constant 0 : i32
    %c0_i32_0 = arith.constant 0 : i32
    return %c0_i32, %arg0 : i32, i32
  }
}

</mosaic_0001>

<llo_original>
// kernel: tpu_custom_call.1
$region0: #{tpu_custom_call.1}
  #allocation0 [shape = 'u32[]', space=smem, size = 0x4, offset = 0x4, fixed_abs, tag = 'smem constant byte address 0x4 - core index']
  #allocation1 [shape = 'u32[144,128]{1,0:T(1,128)}', space=vmem, size = 0x12000, scoped, tag = 'internal scratch']
  %s0 = inlined_call_operand.vmem [shape: f32[8,512], index: 0, kind: input, shape index: {}]
  %s1 = inlined_call_operand.vmem [shape: f32[8,256], index: 1, kind: input, shape index: {}]
  %s2 = inlined_call_operand.vmem [shape: f32[16,8], index: 2, kind: input, shape index: {}]
  %s3 = inlined_call_operand.vmem [shape: f32[16,1], index: 3, kind: input, shape index: {}]
  %s4 = inlined_call_operand.vmem [shape: f32[8,144], index: 4, kind: input, shape index: {}]
  %s5 = inlined_call_operand.vmem [shape: f32[8,1], index: 5, kind: input, shape index: {}]
  %s6 = inlined_call_operand.hbm [shape: f32[8,512], index: 6, kind: output, shape index: {}]
  %s7 = sld [smem:[#allocation0]]
  $region57: #{tpu_custom_call.1} parent=0
    _
  %s9 = ssub.s32 1, %s7
  %s10 = scalar_select 0, %s9, %s7
  $region1: #{tpu_custom_call.1} parent=0
    #allocation2 [shape = 'u8[16384]{0}', space=vmem, size = 0x4000, scoped, tag = 'output window, operand 0']
    #allocation3 [shape = 's32[2]{0}', space=sflag, size = 0x8, scoped, tag = 'scoped memory for tpu_custom_call.1']
    %11 = vsyncpa [#allocation3], 0
    %s12 = scalar_lea.sflag [#allocation3], 1
    %13 = vsyncpa %s12, 0
    loop: start=0, step=1, limit=4
    $region2: #{tpu_custom_call.1} parent=1 // loop_pre_header
      _
    $region3: #{tpu_custom_call.1} parent=1 // loop_header
      %s15 = sphi 0, %s19
      %p16 = scmp.ge.s32.totalorder %s15, 4
      %s25 = sphi 0, %s27
      %s28 = sphi 0, %s25
      %s29 = sphi 0, %s28
      %s45 = sphi 0, %s29
      %s49 = sphi 0, %s49
      %s51 = sphi 0, %s49
      %s52 = sphi 0, %s51
      %s66 = sphi 0, %s52
      %s70 = sphi 0, %s70
      %s72 = sphi 0, %s70
      %s73 = sphi 0, %s72
      %s87 = sphi 0, %s73
      %s91 = sphi 0, %s91
      %s93 = sphi 0, %s91
      %s94 = sphi 0, %s93
      %s108 = sphi 0, %s94
      %s112 = sphi 0, %s112
      %s114 = sphi 0, %s112
      %s115 = sphi 0, %s114
      %s129 = sphi 0, %s115
      %s133 = sphi 0, %s133
      %s135 = sphi 0, %s133
      %s136 = sphi 0, %s135
      %s150 = sphi 0, %s136
      %s156 = sphi 0, %s158
      %s159 = sphi 0, %s156
      %s160 = sphi 0, %s159
      %s176 = sphi 0, %s160
    $region4: #{tpu_custom_call.1} parent=1 // loop_header_branch
      %18 = sbr.rel (%p16) target = $region8
    $region5: #{tpu_custom_call.1} parent=1 // loop_body
      %s20 = ssub.s32 %s15, 1
      %s21 = ssub.s32 %s15, 2
      %s22 = sadd.s32 %s15, 1
      %s23 = ssub.s32 %s15, %s22
      %p24 = scmp.eq.s32.totalorder %s23, 0
      %s26 = sadd.s32 %s25, 1
      %s27 = scalar_select %p24, %s25, %s26
      %p30 = pneg %p24
      %p31 = scmp.eq.s32.totalorder %s15, 1
      %p32 = por %p30, %p31
      %p33 = scmp.ne.s32.totalorder %s25, %s28
      %p34 = scmp.eq.s32.totalorder %s15, 0
      %p35 = por %p33, %p34
      %p36 = scmp.ne.s32.totalorder %s25, %s28
      %p37 = scmp.eq.s32.totalorder %s20, 1
      %p38 = por %p36, %p37
      %p39 = scmp.ne.s32.totalorder %s28, %s29
      %p40 = scmp.eq.s32.totalorder %s20, 0
      %p41 = por %p39, %p40
      %p42 = scmp.ne.s32.totalorder %s28, %s29
      %p43 = scmp.eq.s32.totalorder %s21, 1
      %p44 = por %p42, %p43
      %p46 = scmp.ne.s32.totalorder %s29, %s45
      %p47 = scmp.eq.s32.totalorder %s21, 0
      %p48 = por %p46, %p47
      %s50 = sadd.s32 %s49, 1
      %p53 = scmp.eq.s32.totalorder %s15, 1
      %p54 = scmp.ne.s32.totalorder %s49, %s51
      %p55 = scmp.eq.s32.totalorder %s15, 0
      %p56 = por %p54, %p55
      %p57 = scmp.ne.s32.totalorder %s49, %s51
      %p58 = scmp.eq.s32.totalorder %s20, 1
      %p59 = por %p57, %p58
      %p60 = scmp.ne.s32.totalorder %s51, %s52
      %p61 = scmp.eq.s32.totalorder %s20, 0
      %p62 = por %p60, %p61
      %p63 = scmp.ne.s32.totalorder %s51, %s52
      %p64 = scmp.eq.s32.totalorder %s21, 1
      %p65 = por %p63, %p64
      %p67 = scmp.ne.s32.totalorder %s52, %s66
      %p68 = scmp.eq.s32.totalorder %s21, 0
      %p69 = por %p67, %p68
      %s71 = sadd.s32 %s70, 1
      %p74 = scmp.eq.s32.totalorder %s15, 1
      %p75 = scmp.ne.s32.totalorder %s70, %s72
      %p76 = scmp.eq.s32.totalorder %s15, 0
      %p77 = por %p75, %p76
      %p78 = scmp.ne.s32.totalorder %s70, %s72
      %p79 = scmp.eq.s32.totalorder %s20, 1
      %p80 = por %p78, %p79
      %p81 = scmp.ne.s32.totalorder %s72, %s73
      %p82 = scmp.eq.s32.totalorder %s20, 0
      %p83 = por %p81, %p82
      %p84 = scmp.ne.s32.totalorder %s72, %s73
      %p85 = scmp.eq.s32.totalorder %s21, 1
      %p86 = por %p84, %p85
      %p88 = scmp.ne.s32.totalorder %s73, %s87
      %p89 = scmp.eq.s32.totalorder %s21, 0
      %p90 = por %p88, %p89
      %s92 = sadd.s32 %s91, 1
      %p95 = scmp.eq.s32.totalorder %s15, 1
      %p96 = scmp.ne.s32.totalorder %s91, %s93
      %p97 = scmp.eq.s32.totalorder %s15, 0
      %p98 = por %p96, %p97
      %p99 = scmp.ne.s32.totalorder %s91, %s93
      %p100 = scmp.eq.s32.totalorder %s20, 1
      %p101 = por %p99, %p100
      %p102 = scmp.ne.s32.totalorder %s93, %s94
      %p103 = scmp.eq.s32.totalorder %s20, 0
      %p104 = por %p102, %p103
      %p105 = scmp.ne.s32.totalorder %s93, %s94
      %p106 = scmp.eq.s32.totalorder %s21, 1
      %p107 = por %p105, %p106
      %p109 = scmp.ne.s32.totalorder %s94, %s108
      %p110 = scmp.eq.s32.totalorder %s21, 0
      %p111 = por %p109, %p110
      %s113 = sadd.s32 %s112, 1
      %p116 = scmp.eq.s32.totalorder %s15, 1
      %p117 = scmp.ne.s32.totalorder %s112, %s114
      %p118 = scmp.eq.s32.totalorder %s15, 0
      %p119 = por %p117, %p118
      %p120 = scmp.ne.s32.totalorder %s112, %s114
      %p121 = scmp.eq.s32.totalorder %s20, 1
      %p122 = por %p120, %p121
      %p123 = scmp.ne.s32.totalorder %s114, %s115
      %p124 = scmp.eq.s32.totalorder %s20, 0
      %p125 = por %p123, %p124
      %p126 = scmp.ne.s32.totalorder %s114, %s115
      %p127 = scmp.eq.s32.totalorder %s21, 1
      %p128 = por %p126, %p127
      %p130 = scmp.ne.s32.totalorder %s115, %s129
      %p131 = scmp.eq.s32.totalorder %s21, 0
      %p132 = por %p130, %p131
      %s134 = sadd.s32 %s133, 1
      %p137 = scmp.eq.s32.totalorder %s15, 1
      %p138 = scmp.ne.s32.totalorder %s133, %s135
      %p139 = scmp.eq.s32.totalorder %s15, 0
      %p140 = por %p138, %p139
      %p141 = scmp.ne.s32.totalorder %s133, %s135
      %p142 = scmp.eq.s32.totalorder %s20, 1
      %p143 = por %p141, %p142
      %p144 = scmp.ne.s32.totalorder %s135, %s136
      %p145 = scmp.eq.s32.totalorder %s20, 0
      %p146 = por %p144, %p145
      %p147 = scmp.ne.s32.totalorder %s135, %s136
      %p148 = scmp.eq.s32.totalorder %s21, 1
      %p149 = por %p147, %p148
      %p151 = scmp.ne.s32.totalorder %s136, %s150
      %p152 = scmp.eq.s32.totalorder %s21, 0
      %p153 = por %p151, %p152
      %s154 = ssub.s32 %s15, %s22
      %p155 = scmp.eq.s32.totalorder %s154, 0
      %s157 = sadd.s32 %s156, 1
      %s158 = scalar_select %p155, %s156, %s157
      %p161 = pneg %p155
      %p162 = scmp.eq.s32.totalorder %s15, 1
      %p163 = por %p161, %p162
      %p164 = scmp.ne.s32.totalorder %s156, %s159
      %p165 = scmp.eq.s32.totalorder %s15, 0
      %p166 = por %p164, %p165
      %p167 = scmp.ne.s32.totalorder %s156, %s159
      %p168 = scmp.eq.s32.totalorder %s20, 1
      %p169 = por %p167, %p168
      %p170 = scmp.ne.s32.totalorder %s159, %s160
      %p171 = scmp.eq.s32.totalorder %s20, 0
      %p172 = por %p170, %p171
      %p173 = scmp.ne.s32.totalorder %s159, %s160
      %p174 = scmp.eq.s32.totalorder %s21, 1
      %p175 = por %p173, %p174
      %p177 = scmp.ne.s32.totalorder %s160, %s176
      %p178 = scmp.eq.s32.totalorder %s21, 0
      %p179 = por %p177, %p178
      %p180 = scmp.le.s32.totalorder 1, %s15
      %p181 = scmp.lt.s32.totalorder %s15, 3
      %p182 = pnand %p180, %p181
      %p183 = pneg %p182
      // Predicated region
      $region9: #{tpu_custom_call.1} parent=5 // pred_check
        _
      $region10: #{tpu_custom_call.1} parent=5 // pred_check_branch
        %185 = sbr.rel (%p182) target = $region12
      $region11: #{tpu_custom_call.1} parent=5 // pred_region
        %s186 = ssub.s32 %s15, 1
        // Predicated region
        $region13: #{tpu_custom_call.1} parent=11 // pred_check
          %p187 = pneg %p62
        $region14: #{tpu_custom_call.1} parent=11 // pred_check_branch
          %189 = sbr.rel (%p187) target = $region16
        $region15: #{tpu_custom_call.1} parent=11 // pred_region
          _
        $region16: #{tpu_custom_call.1} parent=11 // pred_fallthru
          _
        // Predicated region
        $region17: #{tpu_custom_call.1} parent=11 // pred_check
          %p190 = pneg %p83
        $region18: #{tpu_custom_call.1} parent=11 // pred_check_branch
          %192 = sbr.rel (%p190) target = $region20
        $region19: #{tpu_custom_call.1} parent=11 // pred_region
          _
        $region20: #{tpu_custom_call.1} parent=11 // pred_fallthru
          _
        // Predicated region
        $region21: #{tpu_custom_call.1} parent=11 // pred_check
          %p193 = pneg %p104
        $region22: #{tpu_custom_call.1} parent=11 // pred_check_branch
          %195 = sbr.rel (%p193) target = $region24
        $region23: #{tpu_custom_call.1} parent=11 // pred_region
          _
        $region24: #{tpu_custom_call.1} parent=11 // pred_fallthru
          _
        // Predicated region
        $region25: #{tpu_custom_call.1} parent=11 // pred_check
          %p196 = pneg %p125
        $region26: #{tpu_custom_call.1} parent=11 // pred_check_branch
          %198 = sbr.rel (%p196) target = $region28
        $region27: #{tpu_custom_call.1} parent=11 // pred_region
          _
        $region28: #{tpu_custom_call.1} parent=11 // pred_fallthru
          _
        // Predicated region
        $region29: #{tpu_custom_call.1} parent=11 // pred_check
          %p199 = pneg %p146
        $region30: #{tpu_custom_call.1} parent=11 // pred_check_branch
          %201 = sbr.rel (%p199) target = $region32
        $region31: #{tpu_custom_call.1} parent=11 // pred_region
          _
        $region32: #{tpu_custom_call.1} parent=11 // pred_fallthru
          _
      $region12: #{tpu_custom_call.1} parent=5 // pred_fallthru
        _
      %p202 = scmp.lt.s32.totalorder %s15, 2
      // Predicated region
      $region33: #{tpu_custom_call.1} parent=5 // pred_check
        %p203 = pneg %p202
      $region34: #{tpu_custom_call.1} parent=5 // pred_check_branch
        %205 = sbr.rel (%p203) target = $region36
      $region35: #{tpu_custom_call.1} parent=5 // pred_region
        // Predicated region
        $region37: #{tpu_custom_call.1} parent=35 // pred_check
          %p206 = pneg %p35
        $region38: #{tpu_custom_call.1} parent=35 // pred_check_branch
          %208 = sbr.rel (%p206) target = $region40
        $region39: #{tpu_custom_call.1} parent=35 // pred_region
          %s209 = smul.u32 2, %s15
          %p210 = scmp.lt.s32.totalorder %s209, 3
          %s211 = scalar_select %p210, %s209, 3
          %s212 = smul.addr %s211, 8
          %s213 = scalar_lea.vmem %s0, %s212
          %s214 = smul.u32 2, %s15
        $region40: #{tpu_custom_call.1} parent=35 // pred_fallthru
          _
      $region36: #{tpu_custom_call.1} parent=5 // pred_fallthru
        _
      %p215 = scmp.le.s32.totalorder 1, %s15
      %p216 = scmp.lt.s32.totalorder %s15, 3
      %p217 = pnand %p215, %p216
      %p218 = pneg %p217
      // Predicated region
      $region41: #{tpu_custom_call.1} parent=5 // pred_check
        _
      $region42: #{tpu_custom_call.1} parent=5 // pred_check_branch
        %220 = sbr.rel (%p217) target = $region44
      $region43: #{tpu_custom_call.1} parent=5 // pred_region
        %s221 = ssub.s32 %s15, 1
        %s222 = smul.u32 2, %s20
        %p223 = scmp.lt.s32.totalorder %s222, 3
        %s224 = scalar_select %p223, %s222, 3
        %s225 = smul.addr %s224, 8
        %s226 = scalar_lea.vmem %s0, %s225
        %p227 = pneg %p41
        %p228 = pneg %p38
        %p229 = pneg %p62
        %p230 = pneg %p59
        %p231 = pneg %p83
        %p232 = pneg %p80
        %p233 = pneg %p104
        %p234 = pneg %p101
        %p235 = pneg %p125
        %p236 = pneg %p122
        %p237 = pneg %p146
        %p238 = pneg %p143
        %p239 = pneg %p172
        %p240 = pneg %p169
        %s241 = sand.u32 %s159, 1
        %s242 = scalar_lea.sflag [#allocation3], %s241
        %s243 = sand.u32 %s159, 1
        %s244 = smul.addr %s243, 16
        %s245 = scalar_lea.vmem [#allocation2], %s244
        %s246 = smul.u32 2, %s20
        %p247 = scmp.lt.s32.totalorder %s246, 3
        %s248 = scalar_select %p247, %s246, 3
        %s249 = smul.addr %s248, 8
        %s250 = scalar_lea.vmem %s0, %s249
        %s251 = smul.u32 2, %s20
        %s252 = smul.u32 2, %s20
        %v253 = vld [vmem:[%s250] sm:$0xff]
        %v254 = vld [vmem:[%s250 + $0x8] sm:$0xff]
        %v255 = vld [vmem:[%s2] sm:$0xff]
        %v256 = vld [vmem:[%s2 + $0x8] sm:$0xff]
        %v257 = vld [vmem:[%s3] sm:$0xff]
        %v258 = vld [vmem:[%s3 + $0x8] sm:$0xff]
        %260 = vset.pattern.permute.xlu0 0
        %261 = vperm.xlu0 %260, %v257
        %v262 = vpop.permute.xlu0 %261
        %265 = vset.pattern.permute.xlu0 0
        %266 = vperm.xlu0 %265, %v258
        %v267 = vpop.permute.xlu0 %266
        %vm269 = vcmask 64512
        %v271 = vsel %vm269, %v255, 0
        %v274 = vsel %vm269, %v256, 0
        %276 = vmatprep.subr.mxu0 %v254
        %277 = vmatpush1.msra.mxu0 %v253
        %278 = vmatprep.subr.mxu0 0.0
        %279 = vmatpush1.msra.mxu0 0.0
        %280 = vmatprep.subr.mxu0 0.0
        %281 = vmatpush1.msra.mxu0 0.0
        %282 = vmatprep.subr.mxu0 0.0
        %283 = vmatpush1.msra.mxu0 0.0
        %284 = vmatprep.subr.mxu0 0.0
        %285 = vmatpush1.msra.mxu0 0.0
        %286 = vmatprep.subr.mxu0 0.0
        %287 = vmatpush1.msra.mxu0 0.0
        %288 = vmatprep.subr.mxu0 0.0
        %289 = vmatpush1.msra.mxu0 0.0
        %290 = vmatprep.subr.mxu0 0.0
        %291 = vmatpush1.msra.mxu0 0.0
        %292 = vmatprep.subr.mxu0 0.0
        %293 = vmatpush1.msra.mxu0 0.0
        %294 = vmatprep.subr.mxu0 0.0
        %295 = vmatpush1.msra.mxu0 0.0
        %296 = vmatprep.subr.mxu0 0.0
        %297 = vmatpush1.msra.mxu0 0.0
        %298 = vmatprep.subr.mxu0 0.0
        %299 = vmatpush1.msra.mxu0 0.0
        %300 = vmatprep.subr.mxu0 0.0
        %301 = vmatpush1.msra.mxu0 0.0
        %302 = vmatprep.subr.mxu0 0.0
        %303 = vmatpush1.msra.mxu0 0.0
        %304 = vmatprep.subr.mxu0 0.0
        %305 = vmatpush1.msra.mxu0 0.0
        %306 = vmatprep.subr.mxu0 0.0
        %307 = vmatpush1.msra.mxu0 0.0
        %308 = vmatprep.subr.mxu0 0.0
        %309 = vmatpush1.msra.mxu0 0.0
        %310 = vmatprep.subr.mxu0 0.0
        %311 = vmatpush1.msra.mxu0 0.0
        %312 = vmatprep.subr.mxu0 0.0
        %313 = vmatpush1.msra.mxu0 0.0
        %314 = vmatprep.subr.mxu0 0.0
        %315 = vmatpush1.msra.mxu0 0.0
        %316 = vmatprep.subr.mxu0 0.0
        %317 = vmatpush1.msra.mxu0 0.0
        %318 = vmatprep.subr.mxu0 0.0
        %319 = vmatpush1.msra.mxu0 0.0
        %320 = vmatprep.subr.mxu0 0.0
        %321 = vmatpush1.msra.mxu0 0.0
        %322 = vmatprep.subr.mxu0 0.0
        %323 = vmatpush1.msra.mxu0 0.0
        %324 = vmatprep.subr.mxu0 0.0
        %325 = vmatpush1.msra.mxu0 0.0
        %326 = vmatprep.subr.mxu0 0.0
        %327 = vmatpush1.msra.mxu0 0.0
        %328 = vmatprep.subr.mxu0 0.0
        %329 = vmatpush1.msra.mxu0 0.0
        %330 = vmatprep.subr.mxu0 0.0
        %331 = vmatpush1.msra.mxu0 0.0
        %332 = vmatprep.subr.mxu0 0.0
        %333 = vmatpush1.msra.mxu0 0.0
        %334 = vmatprep.subr.mxu0 0.0
        %335 = vmatpush1.msra.mxu0 0.0
        %336 = vmatprep.subr.mxu0 0.0
        %337 = vmatpush1.msra.mxu0 0.0
        %338 = vmatprep.subr.mxu0 0.0
        %339 = vmatpush1.msra.mxu0 0.0
        %340 = vmatprep.mubr.f32.mxu0 0.0
        %341 = vmatmul.mubr.f32.gmra.mrb[0].mxu0 %v271
        %v342 = vpop.f32.mrb[0].mxu0
        %v343 = vadd.f32 %v262, %v342
        %v344 = vpop.f32.mrb[0].mxu0
        %v345 = vadd.f32 %v262, %v344
        %346 = vmatprep.mubr.f32.mxu0 0.0
        %347 = vmatmul.mubr.f32.gmra.mrb[0].mxu0 %v274
        %v348 = vpop.f32.mrb[0].mxu0
        %v349 = vadd.f32 %v267, %v348
        %v350 = vpop.f32.mrb[0].mxu0
        %v351 = vadd.f32 %v267, %v350
        %352 = vdwg.mxu0
        %v353 = vmul.f32 %v343, 0.5
        %v354 = vmul.f32 %v345, 0.5
        %v355 = vmul.f32 %v349, 0.5
        %v356 = vmul.f32 %v351, 0.5
        %v357 = vtanh.pop %v353
        %v358 = vtanh.pop %v354
        %v359 = vtanh.pop %v355
        %v360 = vtanh.pop %v356
        %v361 = vmul.f32 %v357, 0.5
        %v362 = vmul.f32 %v358, 0.5
        %v363 = vmul.f32 %v359, 0.5
        %v364 = vmul.f32 %v360, 0.5
        %v365 = vadd.f32 %v361, 0.5
        %v366 = vadd.f32 %v362, 0.5
        %v367 = vadd.f32 %v363, 0.5
        %v368 = vadd.f32 %v364, 0.5
        %v369 = vmul.f32 %v343, %v365
        %v370 = vmul.f32 %v345, %v366
        %v371 = vmul.f32 %v349, %v367
        %v372 = vmul.f32 %v351, %v368
        %373 = vrot.lane.b32.xlu0 %v369, 17
        %v374 = vpop.permute.xlu0 %373
        %375 = vrot.lane.b32.xlu0 %v371, 17
        %v376 = vpop.permute.xlu0 %375
        %377 = vrot.lane.b32.xlu0 %v370, 17
        %v378 = vpop.permute.xlu0 %377
        %379 = vrot.lane.b32.xlu0 %v372, 17
        %v380 = vpop.permute.xlu0 %379
        %v381 = vlaneseq
        %v382 = vand.u32 %v381, 127
        %vm383 = vcmp.lt.s32.totalorder %v382, 17
        %v384 = vsel %vm383, %v374, %v378
        %v385 = vsel %vm383, %v376, %v380
        %v386 = vsel %vm383, %v378, %v374
        %v387 = vsel %vm383, %v380, %v376
        %v388 = vld [vmem:[%s1] ss:$8 sm:$0x3]
        %v390 = vlaneseq
        %v391 = vshrl.u32 %v390, 7
        %v392 = vsub.s32 0, %v391
        %v393 = vrot.slane %v388, %v392
        %v394 = vlaneseq
        %v395 = vshrl.u32 %v394, 7
        %v396 = vsub.s32 1, %v395
        %v397 = vrot.slane %v388, %v396
        %v400 = vmul.f32 %v386, %v393
        %v401 = vmul.f32 %v384, %v397
        %v402 = vmul.f32 %v387, %v393
        %v403 = vmul.f32 %v385, %v397
        %404 = vrot.lane.b32.xlu0 %v369, 16
        %v405 = vpop.permute.xlu0 %404
        %406 = vrot.lane.b32.xlu0 %v371, 16
        %v407 = vpop.permute.xlu0 %406
        %408 = vrot.lane.b32.xlu0 %v370, 16
        %v409 = vpop.permute.xlu0 %408
        %410 = vrot.lane.b32.xlu0 %v372, 16
        %v411 = vpop.permute.xlu0 %410
        %vm412 = vcmp.lt.s32.totalorder %v382, 16
        %v413 = vsel %vm412, %v405, %v409
        %v414 = vsel %vm412, %v407, %v411
        %v415 = vsel %vm412, %v409, %v405
        %v416 = vsel %vm412, %v411, %v407
        %s417 = scalar_lea.vmem %s1, 1
        %v418 = vld [vmem:[%s417] ss:$8 sm:$0x3]
        %v420 = vlaneseq
        %v421 = vshrl.u32 %v420, 7
        %v422 = vsub.s32 0, %v421
        %v423 = vrot.slane %v418, %v422
        %v424 = vlaneseq
        %v425 = vshrl.u32 %v424, 7
        %v426 = vsub.s32 1, %v425
        %v427 = vrot.slane %v418, %v426
        %v430 = vmul.f32 %v415, %v423
        %v431 = vmul.f32 %v413, %v427
        %v432 = vmul.f32 %v416, %v423
        %v433 = vmul.f32 %v414, %v427
        %434 = vrot.lane.b32.xlu0 %v369, 15
        %v435 = vpop.permute.xlu0 %434
        %436 = vrot.lane.b32.xlu0 %v371, 15
        %v437 = vpop.permute.xlu0 %436
        %438 = vrot.lane.b32.xlu0 %v370, 15
        %v439 = vpop.permute.xlu0 %438
        %440 = vrot.lane.b32.xlu0 %v372, 15
        %v441 = vpop.permute.xlu0 %440
        %vm442 = vcmp.lt.s32.totalorder %v382, 15
        %v443 = vsel %vm442, %v435, %v439
        %v444 = vsel %vm442, %v437, %v441
        %v445 = vsel %vm442, %v439, %v435
        %v446 = vsel %vm442, %v441, %v437
        %s447 = scalar_lea.vmem %s1, 2
        %v448 = vld [vmem:[%s447] ss:$8 sm:$0x3]
        %v450 = vlaneseq
        %v451 = vshrl.u32 %v450, 7
        %v452 = vsub.s32 0, %v451
        %v453 = vrot.slane %v448, %v452
        %v454 = vlaneseq
        %v455 = vshrl.u32 %v454, 7
        %v456 = vsub.s32 1, %v455
        %v457 = vrot.slane %v448, %v456
        %v460 = vmul.f32 %v445, %v453
        %v461 = vmul.f32 %v443, %v457
        %v462 = vmul.f32 %v446, %v453
        %v463 = vmul.f32 %v444, %v457
        %v464 = vld [vmem:[%s4] sm:$0xff]
        %465 = vrot.lane.b32.xlu0 %v369, 1
        %v466 = vpop.permute.xlu0 %465
        %467 = vrot.lane.b32.xlu0 %v371, 1
        %v468 = vpop.permute.xlu0 %467
        %469 = vrot.lane.b32.xlu0 %v370, 1
        %v470 = vpop.permute.xlu0 %469
        %471 = vrot.lane.b32.xlu0 %v372, 1
        %v472 = vpop.permute.xlu0 %471
        %vm473 = vcmp.lt.s32.totalorder %v382, 1
        %v474 = vsel %vm473, %v466, %v470
        %v475 = vsel %vm473, %v468, %v472
        %v476 = vsel %vm473, %v470, %v466
        %v477 = vsel %vm473, %v472, %v468
        %s478 = scalar_lea.vmem %s1, 3
        %v479 = vld [vmem:[%s478] ss:$8 sm:$0x3]
        %v481 = vlaneseq
        %v482 = vshrl.u32 %v481, 7
        %v483 = vsub.s32 0, %v482
        %v484 = vrot.slane %v479, %v483
        %v485 = vlaneseq
        %v486 = vshrl.u32 %v485, 7
        %v487 = vsub.s32 1, %v486
        %v488 = vrot.slane %v479, %v487
        %v491 = vmul.f32 %v476, %v484
        %v492 = vmul.f32 %v474, %v488
        %v493 = vmul.f32 %v477, %v484
        %v494 = vmul.f32 %v475, %v488
        %495 = vrot.lane.b32.xlu0 %v369, 127
        %v496 = vpop.permute.xlu0 %495
        %497 = vrot.lane.b32.xlu0 %v371, 127
        %v498 = vpop.permute.xlu0 %497
        %499 = vrot.lane.b32.xlu0 %v370, 127
        %v500 = vpop.permute.xlu0 %499
        %501 = vrot.lane.b32.xlu0 %v372, 127
        %v502 = vpop.permute.xlu0 %501
        %vm503 = vcmp.lt.s32.totalorder %v382, 127
        %v504 = vsel %vm503, %v496, %v500
        %v505 = vsel %vm503, %v498, %v502
        %v506 = vsel %vm503, %v500, %v496
        %v507 = vsel %vm503, %v502, %v498
        %s508 = scalar_lea.vmem %s1, 4
        %v509 = vld [vmem:[%s508] ss:$8 sm:$0x3]
        %v511 = vlaneseq
        %v512 = vshrl.u32 %v511, 7
        %v513 = vsub.s32 0, %v512
        %v514 = vrot.slane %v509, %v513
        %v515 = vlaneseq
        %v516 = vshrl.u32 %v515, 7
        %v517 = vsub.s32 1, %v516
        %v518 = vrot.slane %v509, %v517
        %v521 = vmul.f32 %v504, %v514
        %v522 = vmul.f32 %v506, %v518
        %v523 = vmul.f32 %v505, %v514
        %v524 = vmul.f32 %v507, %v518
        %526 = vrot.lane.b32.xlu0 %v464, 80
        %v527 = vpop.permute.xlu0 %526
        %vm528 = vcmask 392192
        %v529 = vsel %vm528, %v527, 0
        %531 = vmatprep.subr.mxu0 %v492
        %532 = vmatpush1.msra.mxu0 %v491
        %533 = vmatprep.subr.mxu0 %v494
        %534 = vmatpush1.msra.mxu0 %v493
        %535 = vmatprep.subr.mxu0 %v370
        %536 = vmatpush1.msra.mxu0 %v369
        %537 = vmatprep.subr.mxu0 %v372
        %538 = vmatpush1.msra.mxu0 %v371
        %539 = vmatprep.subr.mxu0 %v522
        %540 = vmatpush1.msra.mxu0 %v521
        %541 = vmatprep.subr.mxu0 %v524
        %542 = vmatpush1.msra.mxu0 %v523
        %543 = vmatprep.subr.mxu0 0.0
        %544 = vmatpush1.msra.mxu0 0.0
        %545 = vmatprep.subr.mxu0 0.0
        %546 = vmatpush1.msra.mxu0 0.0
        %547 = vmatprep.subr.mxu0 0.0
        %548 = vmatpush1.msra.mxu0 0.0
        %549 = vmatprep.subr.mxu0 0.0
        %550 = vmatpush1.msra.mxu0 0.0
        %551 = vmatprep.subr.mxu0 0.0
        %552 = vmatpush1.msra.mxu0 0.0
        %553 = vmatprep.subr.mxu0 0.0
        %554 = vmatpush1.msra.mxu0 0.0
        %555 = vmatprep.subr.mxu0 0.0
        %556 = vmatpush1.msra.mxu0 0.0
        %557 = vmatprep.subr.mxu0 0.0
        %558 = vmatpush1.msra.mxu0 0.0
        %559 = vmatprep.subr.mxu0 0.0
        %560 = vmatpush1.msra.mxu0 0.0
        %561 = vmatprep.subr.mxu0 0.0
        %562 = vmatpush1.msra.mxu0 0.0
        %563 = vmatprep.subr.mxu0 0.0
        %564 = vmatpush1.msra.mxu0 0.0
        %565 = vmatprep.subr.mxu0 0.0
        %566 = vmatpush1.msra.mxu0 0.0
        %567 = vmatprep.subr.mxu0 0.0
        %568 = vmatpush1.msra.mxu0 0.0
        %569 = vmatprep.subr.mxu0 0.0
        %570 = vmatpush1.msra.mxu0 0.0
        %571 = vmatprep.subr.mxu0 0.0
        %572 = vmatpush1.msra.mxu0 0.0
        %573 = vmatprep.subr.mxu0 0.0
        %574 = vmatpush1.msra.mxu0 0.0
        %575 = vmatprep.subr.mxu0 0.0
        %576 = vmatpush1.msra.mxu0 0.0
        %577 = vmatprep.subr.mxu0 0.0
        %578 = vmatpush1.msra.mxu0 0.0
        %579 = vmatprep.subr.mxu0 0.0
        %580 = vmatpush1.msra.mxu0 0.0
        %581 = vmatprep.subr.mxu0 0.0
        %582 = vmatpush1.msra.mxu0 0.0
        %583 = vmatprep.subr.mxu0 0.0
        %584 = vmatpush1.msra.mxu0 0.0
        %585 = vmatprep.subr.mxu0 0.0
        %586 = vmatpush1.msra.mxu0 0.0
        %587 = vmatprep.subr.mxu0 0.0
        %588 = vmatpush1.msra.mxu0 0.0
        %589 = vmatprep.subr.mxu0 0.0
        %590 = vmatpush1.msra.mxu0 0.0
        %591 = vmatprep.subr.mxu0 0.0
        %592 = vmatpush1.msra.mxu0 0.0
        %593 = vmatprep.subr.mxu0 0.0
        %594 = vmatpush1.msra.mxu0 0.0
        %595 = vmatprep.mubr.f32.mxu0 0.0
        %596 = vmatmul.mubr.f32.gmra.mrb[0].mxu0 %v529
        %v597 = vpop.f32.mrb[0].mxu0
        %v598 = vadd.f32 0.0, %v597
        %v599 = vpop.f32.mrb[0].mxu0
        %v600 = vadd.f32 0.0, %v599
        %601 = vdwg.mxu0
        %v602 = vsel %vm528, %v464, 0
        %604 = vmatprep.subr.mxu0 %v401
        %605 = vmatpush1.msra.mxu0 %v400
        %606 = vmatprep.subr.mxu0 %v403
        %607 = vmatpush1.msra.mxu0 %v402
        %608 = vmatprep.subr.mxu0 %v431
        %609 = vmatpush1.msra.mxu0 %v430
        %610 = vmatprep.subr.mxu0 %v433
        %611 = vmatpush1.msra.mxu0 %v432
        %612 = vmatprep.subr.mxu0 %v461
        %613 = vmatpush1.msra.mxu0 %v460
        %614 = vmatprep.subr.mxu0 %v463
        %615 = vmatpush1.msra.mxu0 %v462
        %616 = vmatprep.subr.mxu0 0.0
        %617 = vmatpush1.msra.mxu0 0.0
        %618 = vmatprep.subr.mxu0 0.0
        %619 = vmatpush1.msra.mxu0 0.0
        %620 = vmatprep.subr.mxu0 0.0
        %621 = vmatpush1.msra.mxu0 0.0
        %622 = vmatprep.subr.mxu0 0.0
        %623 = vmatpush1.msra.mxu0 0.0
        %624 = vmatprep.subr.mxu0 0.0
        %625 = vmatpush1.msra.mxu0 0.0
        %626 = vmatprep.subr.mxu0 0.0
        %627 = vmatpush1.msra.mxu0 0.0
        %628 = vmatprep.subr.mxu0 0.0
        %629 = vmatpush1.msra.mxu0 0.0
        %630 = vmatprep.subr.mxu0 0.0
        %631 = vmatpush1.msra.mxu0 0.0
        %632 = vmatprep.subr.mxu0 0.0
        %633 = vmatpush1.msra.mxu0 0.0
        %634 = vmatprep.subr.mxu0 0.0
        %635 = vmatpush1.msra.mxu0 0.0
        %636 = vmatprep.subr.mxu0 0.0
        %637 = vmatpush1.msra.mxu0 0.0
        %638 = vmatprep.subr.mxu0 0.0
        %639 = vmatpush1.msra.mxu0 0.0
        %640 = vmatprep.subr.mxu0 0.0
        %641 = vmatpush1.msra.mxu0 0.0
        %642 = vmatprep.subr.mxu0 0.0
        %643 = vmatpush1.msra.mxu0 0.0
        %644 = vmatprep.subr.mxu0 0.0
        %645 = vmatpush1.msra.mxu0 0.0
        %646 = vmatprep.subr.mxu0 0.0
        %647 = vmatpush1.msra.mxu0 0.0
        %648 = vmatprep.subr.mxu0 0.0
        %649 = vmatpush1.msra.mxu0 0.0
        %650 = vmatprep.subr.mxu0 0.0
        %651 = vmatpush1.msra.mxu0 0.0
        %652 = vmatprep.subr.mxu0 0.0
        %653 = vmatpush1.msra.mxu0 0.0
        %654 = vmatprep.subr.mxu0 0.0
        %655 = vmatpush1.msra.mxu0 0.0
        %656 = vmatprep.subr.mxu0 0.0
        %657 = vmatpush1.msra.mxu0 0.0
        %658 = vmatprep.subr.mxu0 0.0
        %659 = vmatpush1.msra.mxu0 0.0
        %660 = vmatprep.subr.mxu0 0.0
        %661 = vmatpush1.msra.mxu0 0.0
        %662 = vmatprep.subr.mxu0 0.0
        %663 = vmatpush1.msra.mxu0 0.0
        %664 = vmatprep.subr.mxu0 0.0
        %665 = vmatpush1.msra.mxu0 0.0
        %666 = vmatprep.subr.mxu0 0.0
        %667 = vmatpush1.msra.mxu0 0.0
        %668 = vmatprep.mubr.f32.mxu0 0.0
        %669 = vmatmul.mubr.f32.gmra.mrb[0].mxu0 %v602
        %v670 = vpop.f32.mrb[0].mxu0
        %v671 = vadd.f32 %v598, %v670
        %v672 = vpop.f32.mrb[0].mxu0
        %v673 = vadd.f32 %v600, %v672
        %674 = vdwg.mxu0
        %675 = vrot.lane.b32.xlu0 %v369, 113
        %v676 = vpop.permute.xlu0 %675
        %677 = vrot.lane.b32.xlu0 %v371, 113
        %v678 = vpop.permute.xlu0 %677
        %679 = vrot.lane.b32.xlu0 %v370, 113
        %v680 = vpop.permute.xlu0 %679
        %681 = vrot.lane.b32.xlu0 %v372, 113
        %v682 = vpop.permute.xlu0 %681
        %vm683 = vcmp.lt.s32.totalorder %v382, 113
        %v684 = vsel %vm683, %v676, %v680
        %v685 = vsel %vm683, %v678, %v682
        %v686 = vsel %vm683, %v680, %v676
        %v687 = vsel %vm683, %v682, %v678
        %s688 = scalar_lea.vmem %s1, 5
        %v689 = vld [vmem:[%s688] ss:$8 sm:$0x3]
        %v691 = vlaneseq
        %v692 = vshrl.u32 %v691, 7
        %v693 = vsub.s32 0, %v692
        %v694 = vrot.slane %v689, %v693
        %v695 = vlaneseq
        %v696 = vshrl.u32 %v695, 7
        %v697 = vsub.s32 1, %v696
        %v698 = vrot.slane %v689, %v697
        %v701 = vmul.f32 %v684, %v694
        %v702 = vmul.f32 %v686, %v698
        %v703 = vmul.f32 %v685, %v694
        %v704 = vmul.f32 %v687, %v698
        %705 = vrot.lane.b32.xlu0 %v369, 112
        %v706 = vpop.permute.xlu0 %705
        %707 = vrot.lane.b32.xlu0 %v371, 112
        %v708 = vpop.permute.xlu0 %707
        %709 = vrot.lane.b32.xlu0 %v370, 112
        %v710 = vpop.permute.xlu0 %709
        %711 = vrot.lane.b32.xlu0 %v372, 112
        %v712 = vpop.permute.xlu0 %711
        %vm713 = vcmp.lt.s32.totalorder %v382, 112
        %v714 = vsel %vm713, %v706, %v710
        %v715 = vsel %vm713, %v708, %v712
        %v716 = vsel %vm713, %v710, %v706
        %v717 = vsel %vm713, %v712, %v708
        %s718 = scalar_lea.vmem %s1, 6
        %v719 = vld [vmem:[%s718] ss:$8 sm:$0x3]
        %v721 = vlaneseq
        %v722 = vshrl.u32 %v721, 7
        %v723 = vsub.s32 0, %v722
        %v724 = vrot.slane %v719, %v723
        %v725 = vlaneseq
        %v726 = vshrl.u32 %v725, 7
        %v727 = vsub.s32 1, %v726
        %v728 = vrot.slane %v719, %v727
        %v731 = vmul.f32 %v714, %v724
        %v732 = vmul.f32 %v716, %v728
        %v733 = vmul.f32 %v715, %v724
        %v734 = vmul.f32 %v717, %v728
        %735 = vrot.lane.b32.xlu0 %v369, 111
        %v736 = vpop.permute.xlu0 %735
        %737 = vrot.lane.b32.xlu0 %v371, 111
        %v738 = vpop.permute.xlu0 %737
        %739 = vrot.lane.b32.xlu0 %v370, 111
        %v740 = vpop.permute.xlu0 %739
        %741 = vrot.lane.b32.xlu0 %v372, 111
        %v742 = vpop.permute.xlu0 %741
        %vm743 = vcmp.lt.s32.totalorder %v382, 111
        %v744 = vsel %vm743, %v736, %v740
        %v745 = vsel %vm743, %v738, %v742
        %v746 = vsel %vm743, %v740, %v736
        %v747 = vsel %vm743, %v742, %v738
        %s748 = scalar_lea.vmem %s1, 7
        %v749 = vld [vmem:[%s748] ss:$8 sm:$0x3]
        %v751 = vlaneseq
        %v752 = vshrl.u32 %v751, 7
        %v753 = vsub.s32 0, %v752
        %v754 = vrot.slane %v749, %v753
        %v755 = vlaneseq
        %v756 = vshrl.u32 %v755, 7
        %v757 = vsub.s32 1, %v756
        %v758 = vrot.slane %v749, %v757
        %v761 = vmul.f32 %v744, %v754
        %v762 = vmul.f32 %v746, %v758
        %v763 = vmul.f32 %v745, %v754
        %v764 = vmul.f32 %v747, %v758
        %v765 = vld [vmem:[%s4] sm:$0xff]
        %v766 = vld [vmem:[%s4 + $0x8] sm:$0xff]
        %769 = vrot.lane.b32.xlu0 %v765, 32
        %v770 = vpop.permute.xlu0 %769
        %771 = vrot.lane.b32.xlu0 %v766, 32
        %v772 = vpop.permute.xlu0 %771
        %vm773 = vcmask 261120
        %v774 = vsel %vm773, %v770, %v772
        %v775 = vsel %vm528, %v774, 0
        %777 = vmatprep.subr.mxu0 %v702
        %778 = vmatpush1.msra.mxu0 %v701
        %779 = vmatprep.subr.mxu0 %v704
        %780 = vmatpush1.msra.mxu0 %v703
        %781 = vmatprep.subr.mxu0 %v732
        %782 = vmatpush1.msra.mxu0 %v731
        %783 = vmatprep.subr.mxu0 %v734
        %784 = vmatpush1.msra.mxu0 %v733
        %785 = vmatprep.subr.mxu0 %v762
        %786 = vmatpush1.msra.mxu0 %v761
        %787 = vmatprep.subr.mxu0 %v764
        %788 = vmatpush1.msra.mxu0 %v763
        %789 = vmatprep.subr.mxu0 0.0
        %790 = vmatpush1.msra.mxu0 0.0
        %791 = vmatprep.subr.mxu0 0.0
        %792 = vmatpush1.msra.mxu0 0.0
        %793 = vmatprep.subr.mxu0 0.0
        %794 = vmatpush1.msra.mxu0 0.0
        %795 = vmatprep.subr.mxu0 0.0
        %796 = vmatpush1.msra.mxu0 0.0
        %797 = vmatprep.subr.mxu0 0.0
        %798 = vmatpush1.msra.mxu0 0.0
        %799 = vmatprep.subr.mxu0 0.0
        %800 = vmatpush1.msra.mxu0 0.0
        %801 = vmatprep.subr.mxu0 0.0
        %802 = vmatpush1.msra.mxu0 0.0
        %803 = vmatprep.subr.mxu0 0.0
        %804 = vmatpush1.msra.mxu0 0.0
        %805 = vmatprep.subr.mxu0 0.0
        %806 = vmatpush1.msra.mxu0 0.0
        %807 = vmatprep.subr.mxu0 0.0
        %808 = vmatpush1.msra.mxu0 0.0
        %809 = vmatprep.subr.mxu0 0.0
        %810 = vmatpush1.msra.mxu0 0.0
        %811 = vmatprep.subr.mxu0 0.0
        %812 = vmatpush1.msra.mxu0 0.0
        %813 = vmatprep.subr.mxu0 0.0
        %814 = vmatpush1.msra.mxu0 0.0
        %815 = vmatprep.subr.mxu0 0.0
        %816 = vmatpush1.msra.mxu0 0.0
        %817 = vmatprep.subr.mxu0 0.0
        %818 = vmatpush1.msra.mxu0 0.0
        %819 = vmatprep.subr.mxu0 0.0
        %820 = vmatpush1.msra.mxu0 0.0
        %821 = vmatprep.subr.mxu0 0.0
        %822 = vmatpush1.msra.mxu0 0.0
        %823 = vmatprep.subr.mxu0 0.0
        %824 = vmatpush1.msra.mxu0 0.0
        %825 = vmatprep.subr.mxu0 0.0
        %826 = vmatpush1.msra.mxu0 0.0
        %827 = vmatprep.subr.mxu0 0.0
        %828 = vmatpush1.msra.mxu0 0.0
        %829 = vmatprep.subr.mxu0 0.0
        %830 = vmatpush1.msra.mxu0 0.0
        %831 = vmatprep.subr.mxu0 0.0
        %832 = vmatpush1.msra.mxu0 0.0
        %833 = vmatprep.subr.mxu0 0.0
        %834 = vmatpush1.msra.mxu0 0.0
        %835 = vmatprep.subr.mxu0 0.0
        %836 = vmatpush1.msra.mxu0 0.0
        %837 = vmatprep.subr.mxu0 0.0
        %838 = vmatpush1.msra.mxu0 0.0
        %839 = vmatprep.subr.mxu0 0.0
        %840 = vmatpush1.msra.mxu0 0.0
        %841 = vmatprep.mubr.f32.mxu0 0.0
        %842 = vmatmul.mubr.f32.gmra.mrb[0].mxu0 %v775
        %v843 = vpop.f32.mrb[0].mxu0
        %v844 = vadd.f32 0.0, %v843
        %v845 = vpop.f32.mrb[0].mxu0
        %v846 = vadd.f32 0.0, %v845
        %847 = vdwg.mxu0
        %v848 = vadd.f32 %v671, %v844
        %v849 = vadd.f32 %v673, %v846
        %v850 = vld [vmem:[%s5] sm:$0xff]
        %852 = vset.pattern.permute.xlu0 0
        %853 = vperm.xlu0 %852, %v850
        %v854 = vpop.permute.xlu0 %853
        %v856 = vadd.f32 %v848, %v854
        %v857 = vadd.f32 %v849, %v854
        %v858 = vmul.f32 %v856, 0.5
        %v859 = vmul.f32 %v857, 0.5
        %v860 = vtanh.pop %v858
        %v861 = vtanh.pop %v859
        %v862 = vmul.f32 %v860, 0.5
        %v863 = vmul.f32 %v861, 0.5
        %v864 = vadd.f32 %v862, 0.5
        %v865 = vadd.f32 %v863, 0.5
        %v866 = vmul.f32 %v856, %v864
        %v867 = vmul.f32 %v857, %v865
        %v868 = vadd.f32 %v866, %v253
        %v869 = vadd.f32 %v867, %v254
        %870 = vst [vmem:[%s245] sm:$0xff] %v868
        %871 = vst [vmem:[%s245 + $0x8] sm:$0xff] %v869
        %s872 = sand.u32 %s159, 1
        %s873 = scalar_lea.sflag [#allocation3], %s872
        %s874 = sand.u32 %s159, 1
        %s875 = smul.addr %s874, 16
        %s876 = scalar_lea.vmem [#allocation2], %s875
        // Predicated region
        $region45: #{tpu_custom_call.1} parent=43 // pred_check
          %p877 = pneg %p169
        $region46: #{tpu_custom_call.1} parent=43 // pred_check_branch
          %879 = sbr.rel (%p877) target = $region48
        $region47: #{tpu_custom_call.1} parent=43 // pred_region
          %s880 = smul.u32 2, %s20
          %s882 = ssub.s32 256, 256
          %883 = vsyncadd %s873, %s882
          %s884 = smul.addr %s880, 128
          %s885 = scalar_lea.hbm %s6, %s884
          %s887 = sshll.u32 %s876, 4
          %s888 = int_to_ptr.vmem [resolvable:$true] %s887
          %890 = dma.vmem_to_hbm [thread:$0]  %s888, 256, %s885, %s873
        $region48: #{tpu_custom_call.1} parent=43 // pred_fallthru
          _
      $region44: #{tpu_custom_call.1} parent=5 // pred_fallthru
        _
      %p891 = scmp.le.s32.totalorder 2, %s15
      // Predicated region
      $region49: #{tpu_custom_call.1} parent=5 // pred_check
        %p892 = pneg %p891
      $region50: #{tpu_custom_call.1} parent=5 // pred_check_branch
        %894 = sbr.rel (%p892) target = $region52
      $region51: #{tpu_custom_call.1} parent=5 // pred_region
        %s895 = ssub.s32 %s15, 2
        // Predicated region
        $region53: #{tpu_custom_call.1} parent=51 // pred_check
          %p896 = pneg %p175
        $region54: #{tpu_custom_call.1} parent=51 // pred_check_branch
          %898 = sbr.rel (%p896) target = $region56
        $region55: #{tpu_custom_call.1} parent=51 // pred_region
          %s899 = sand.u32 %s160, 1
          %s900 = scalar_lea.sflag [#allocation3], %s899
          %s901 = sand.u32 %s160, 1
          %s902 = smul.addr %s901, 16
          %s903 = scalar_lea.vmem [#allocation2], %s902
          %904 = dma.done %s900, 256
        $region56: #{tpu_custom_call.1} parent=51 // pred_fallthru
          _
      $region52: #{tpu_custom_call.1} parent=5 // pred_fallthru
        _
    $region6: #{tpu_custom_call.1} parent=1 // loop_footer
      %s19 = sadd.s32 1, %s15
    $region7: #{tpu_custom_call.1} parent=1 // loop_footer_branch
      %14 = sbr.rel target = $region3
    $region8: #{tpu_custom_call.1} parent=1 // loop_exit
      _
    %905 = vsyncpa [#allocation3], 1
    %s906 = scalar_lea.sflag [#allocation3], 1
    %907 = vsyncpa %s906, 1

</llo_original>
